<compile_context>
chip_gen: v6e
topology: v6e:2x2x1
jax: 0.10.0
libtpu: 0.0.40
codegen_flags: <defaults>
</compile_context>

<pallas_src>
import jax
import jax.numpy as jnp
from jax import lax
from jax.experimental import pallas as pl
from jax.experimental.pallas import tpu as pltpu


def attention_block_kernel(gamma_ref, x_ref, wq_ref, wkv_ref, o_ref, k_sc, v_sc):
    qi = pl.program_id(1)
    c_out = o_ref.shape[0]       # C (channels)
    tq = o_ref.shape[1]          # query-tile width (lane dim)
    cq_pad = k_sc.shape[0]       # padded query/key channel count (multiple of 8)

    # ---- K/V projections: compute once per batch element, cache in bf16 VMEM. ------
    # Correct only because the qi axis is "arbitrary" (sequential per core) and the
    # scratch persists across grid steps.  Do NOT mark the qi axis "parallel".
    @pl.when(qi == 0)
    def _():
        xb = x_ref[...].astype(jnp.bfloat16)                       # (C+1, HW), ones row last
        kv = jnp.dot(wkv_ref[...], xb,
                     preferred_element_type=jnp.float32)           # (CQ_PAD + C, HW) f32
        k_sc[...] = kv[:cq_pad, :].astype(k_sc.dtype)
        v_sc[...] = kv[cq_pad:, :].astype(v_sc.dtype)

    # ---- Query tile of x (lane slice of the resident per-batch x block). -----------
    start = qi * tq
    if tq % 128 == 0:
        start = pl.multiple_of(start, 128)
    x_q = x_ref[:, pl.ds(start, tq)]                               # (C+1, TQ) f32

    # Query projection for this tile only (bias folded into the extra weight column).
    q = jnp.dot(wq_ref[...], x_q.astype(jnp.bfloat16),
                preferred_element_type=jnp.float32)                # (CQ_PAD, TQ) f32

    # energy^T[j, i] = sum_c k[c, j] * q[c, i]  -> keys on sublanes, queries on lanes.
    # RHS contraction is on its leading dim, so no rhs transpose is materialized.
    energy_t = lax.dot_general(
        k_sc[...], q.astype(jnp.bfloat16),
        dimension_numbers=(((0,), (0,)), ((), ())),
        preferred_element_type=jnp.float32)                        # (HW, TQ) f32

    # Unnormalized softmax over the key axis (axis 0); normalization deferred.
    m = jnp.max(energy_t, axis=0, keepdims=True)                   # (1, TQ)
    p = jnp.exp(energy_t - m)                                      # (HW, TQ) f32
    l = jnp.sum(p, axis=0, keepdims=True)                          # (1, TQ) f32

    # out[c, i] = sum_j v[c, j] * p[j, i]  -- canonical (M,K) @ (K,N) matmul.
    out = jnp.dot(v_sc[...], p.astype(jnp.bfloat16),
                  preferred_element_type=jnp.float32)              # (C, TQ) f32

    inv_l = 1.0 / l                                                # exact, tiny vector
    gamma = gamma_ref[0]
    x_res = x_q[:c_out, :]                                         # drop the ones row
    o_ref[...] = (gamma * (out * inv_l) + x_res).astype(o_ref.dtype)


def attention_block(x, wq, bq, wk, bk, wv, bv, gamma):
    """x: (B, C, H, W) f32. wq/wk: (C//8, C), wv: (C, C), biases: (Cout, 1), gamma: (1,)."""
    B, C, H, W = x.shape
    HW = H * W
    Cq = wq.shape[0]
    CQ_PAD = max(8, ((Cq + 7) // 8) * 8)   # pad q/k channels to a full sublane tile

    def pad_rows(a, rows):
        return jnp.pad(a, ((0, rows - a.shape[0]), (0, 0)))

    # Bias folded into an extra weight column (contracted against a ones row of x).
    # Padded q/k rows get a zero weight row AND a zero bias entry (jnp.pad => zeros),
    # so they contribute exactly 0 to the energy.
    wq_aug = jnp.concatenate([pad_rows(wq, CQ_PAD), pad_rows(bq, CQ_PAD)], axis=1)
    wk_aug = jnp.concatenate([pad_rows(wk, CQ_PAD), pad_rows(bk, CQ_PAD)], axis=1)
    wv_aug = jnp.concatenate([wv, bv], axis=1)
    wq_aug = wq_aug.astype(jnp.bfloat16)                            # (CQ_PAD, C+1)
    wkv_aug = jnp.concatenate([wk_aug, wv_aug], axis=0).astype(jnp.bfloat16)  # (CQ_PAD+C, C+1)

    # x stays f32 (exact residual add); ones row appended so biases ride the MXU.
    x_flat = x.reshape(B, C, HW)
    x_aug = jnp.concatenate(
        [x_flat, jnp.ones((B, 1, HW), dtype=x_flat.dtype)], axis=1)  # (B, C+1, HW)

    # Query-tile size: 128-aligned (lane-dense stores); prefer >= 2 tiles per batch so
    # the grid has more than B steps to pipeline.
    if HW % 128 == 0:
        TQ = 256 if (HW % 256 == 0 and HW // 256 >= 2) else 128
    else:
        TQ = HW
    NQ = HW // TQ
    assert NQ * TQ == HW

    # Explicit VMEM budget; cap at 56 MiB so there is headroom on v7x (64 MiB physical).
    est = (2 * (C + 1) * HW * 4                 # per-batch x block (double buffered, f32)
           + (CQ_PAD + C) * HW * (2 + 4)        # bf16 K/V scratch + f32 kv intermediate
           + 3 * TQ * HW * 4                    # energy / p intermediates (f32)
           + 6 * C * TQ * 4                     # out tiles + epilogue temps
           + 4 * (CQ_PAD + C) * (C + 1) * 2)    # bf16 weights (double buffered)
    vmem_limit = int(min(max(4 * est, 32 * 1024 * 1024), 56 * 1024 * 1024))

    out_flat = pl.pallas_call(
        attention_block_kernel,
        out_shape=jax.ShapeDtypeStruct((B, C, HW), jnp.float32),
        grid=(B, NQ),
        in_specs=[
            pl.BlockSpec(memory_space=pltpu.SMEM),                     # gamma (1,)
            pl.BlockSpec((None, C + 1, HW), lambda b, qi: (b, 0, 0)),  # x (+ ones row)
            pl.BlockSpec((CQ_PAD, C + 1), lambda b, qi: (0, 0)),       # wq | bq (bf16)
            pl.BlockSpec((CQ_PAD + C, C + 1), lambda b, qi: (0, 0)),   # wk|bk / wv|bv (bf16)
        ],
        out_specs=pl.BlockSpec((None, C, TQ), lambda b, qi: (b, 0, qi)),
        scratch_shapes=[
            pltpu.VMEM((CQ_PAD, HW), jnp.bfloat16),   # cached K (per batch)
            pltpu.VMEM((C, HW), jnp.bfloat16),        # cached V (per batch)
        ],
        compiler_params=pltpu.CompilerParams(
            dimension_semantics=("parallel", "arbitrary"),
            vmem_limit_bytes=vmem_limit),
    )(gamma, x_aug, wq_aug, wkv_aug)

    return out_flat.reshape(B, C, H, W)


def attention_block_ref(x, wq, bq, wk, bk, wv, bv, gamma):
    """Pure-JAX f32 reference mirroring the PyTorch forward."""
    B, C, H, W = x.shape
    HW = H * W
    xf = x.reshape(B, C, HW)
    q = jnp.einsum('oc,bch->boh', wq, xf) + bq[None]      # (B, Cq, HW)
    k = jnp.einsum('oc,bch->boh', wk, xf) + bk[None]      # (B, Cq, HW)
    v = jnp.einsum('oc,bch->boh', wv, xf) + bv[None]      # (B, C , HW)
    energy = jnp.einsum('bci,bcj->bij', q, k)             # (B, HW, HW)
    attn = jax.nn.softmax(energy, axis=-1)
    out = jnp.einsum('bcj,bij->bci', v, attn)             # (B, C, HW)
    out = gamma[0] * out + xf
    return out.reshape(B, C, H, W)


if __name__ == "__main__":
    # Small shapes consistent with the module (in_channels >= 8 so C//8 >= 1).
    B, C, H, W = 2, 16, 16, 16
    Cq = C // 8

    key = jax.random.PRNGKey(0)
    kx, kq, kbq, kk, kbk, kv, kbv = jax.random.split(key, 7)

    x = jax.random.normal(kx, (B, C, H, W), dtype=jnp.float32)
    wq = 0.1 * jax.random.normal(kq, (Cq, C), dtype=jnp.float32)
    bq = 0.1 * jax.random.normal(kbq, (Cq, 1), dtype=jnp.float32)
    wk = 0.1 * jax.random.normal(kk, (Cq, C), dtype=jnp.float32)
    bk = 0.1 * jax.random.normal(kbk, (Cq, 1), dtype=jnp.float32)
    wv = 0.1 * jax.random.normal(kv, (C, C), dtype=jnp.float32)
    bv = 0.1 * jax.random.normal(kbv, (C, 1), dtype=jnp.float32)
    # PyTorch initializes gamma = 0 (which would make out == x); use a nonzero value so
    # the attention path is actually exercised.
    gamma = jnp.array([0.5], dtype=jnp.float32)

    out = attention_block(x, wq, bq, wk, bk, wv, bv, gamma)
    out = jax.block_until_ready(out)

    ref = attention_block_ref(x, wq, bq, wk, bk, wv, bv, gamma)
    assert out.shape == (B, C, H, W)
    # bf16 MXU inputs (f32 accumulation) vs a pure-f32 reference: relaxed tolerance.
    max_err = float(jnp.max(jnp.abs(out - ref)))
    assert jnp.allclose(out, ref, atol=2e-2, rtol=2e-2), f"mismatch vs reference (max err {max_err})"

    print("KERNEL_OK")
</pallas_src>

<mosaic_0001>
module attributes {stable_mosaic.version = 11 : i64} {
  func.func @attention_block_kernel(%arg0: i32, %arg1: i32, %arg2: memref<1xf32, #tpu.memory_space<smem>>, %arg3: memref<1x17x256xf32, #tpu.memory_space<vmem>>, %arg4: memref<8x17xbf16, #tpu.memory_space<vmem>>, %arg5: memref<24x17xbf16, #tpu.memory_space<vmem>>, %arg6: memref<1x16x128xf32, #tpu.memory_space<vmem>>, %arg7: memref<8x256xbf16, #tpu.memory_space<vmem>>, %arg8: memref<16x256xbf16, #tpu.memory_space<vmem>>) attributes {dimension_semantics = [#tpu.dimension_semantics<parallel>, #tpu.dimension_semantics<arbitrary>], iteration_bounds = array<i64: 2, 2>, scalar_prefetch = 0 : i64, scratch_operands = 2 : i64, tpu.core_type = #tpu.core_type<tc>, window_params = [{transform_indices = @transform_0, window_bounds = array<i64: 1>}, {transform_indices = @transform_1, window_bounds = array<i64: 1, 17, 256>}, {pipeline_mode = #tpu.pipeline_mode<synchronous>, transform_indices = @transform_2, window_bounds = array<i64: 8, 17>}, {pipeline_mode = #tpu.pipeline_mode<synchronous>, transform_indices = @transform_3, window_bounds = array<i64: 24, 17>}, {transform_indices = @transform_4, window_bounds = array<i64: 1, 16, 128>}]} {
    %c0_i32 = arith.constant 0 : i32
    %0 = arith.cmpi eq, %arg1, %c0_i32 : i32
    %1 = arith.extui %0 : i1 to i32
    %c0_i32_0 = arith.constant 0 : i32
    %2 = arith.cmpi ne, %1, %c0_i32_0 : i32
    scf.if %2 {
      %c0_17 = arith.constant 0 : index
      %c0_18 = arith.constant 0 : index
      %c0_19 = arith.constant 0 : index
      %36 = vector.load %arg3[%c0_17, %c0_18, %c0_19] : memref<1x17x256xf32, #tpu.memory_space<vmem>>, vector<1x17x256xf32>
      %37 = vector.shape_cast %36 : vector<1x17x256xf32> to vector<17x256xf32>
      %38 = arith.truncf %37 : vector<17x256xf32> to vector<17x256xbf16>
      %c0_20 = arith.constant 0 : index
      %c0_21 = arith.constant 0 : index
      %39 = vector.load %arg5[%c0_20, %c0_21] : memref<24x17xbf16, #tpu.memory_space<vmem>>, vector<24x17xbf16>
      %cst_22 = arith.constant dense<0.000000e+00> : vector<24x256xf32>
      %40 = tpu.matmul %39, %38, %cst_22 {dimension_numbers = #tpu.dot_dimension_numbers<[1], [0], [0], [1], [0, 0, 1, 1], [], []>} : vector<24x17xbf16>, vector<17x256xbf16>, vector<24x256xf32> -> vector<24x256xf32>
      %41 = vector.extract_strided_slice %40 {offsets = [0, 0], sizes = [8, 256], strides = [1, 1]} : vector<24x256xf32> to vector<8x256xf32>
      %42 = arith.truncf %41 : vector<8x256xf32> to vector<8x256xbf16>
      %c0_23 = arith.constant 0 : index
      %c0_24 = arith.constant 0 : index
      %43 = vector.load %arg7[%c0_23, %c0_24] : memref<8x256xbf16, #tpu.memory_space<vmem>>, vector<8x256xbf16>
      tpu.vector_store %arg7[%c0_23, %c0_24], %42 {strides = array<i32>} : memref<8x256xbf16, #tpu.memory_space<vmem>>, vector<8x256xbf16>,
      %44 = vector.extract_strided_slice %40 {offsets = [8, 0], sizes = [16, 256], strides = [1, 1]} : vector<24x256xf32> to vector<16x256xf32>
      %45 = arith.truncf %44 : vector<16x256xf32> to vector<16x256xbf16>
      %c0_25 = arith.constant 0 : index
      %c0_26 = arith.constant 0 : index
      %46 = vector.load %arg8[%c0_25, %c0_26] : memref<16x256xbf16, #tpu.memory_space<vmem>>, vector<16x256xbf16>
      tpu.vector_store %arg8[%c0_25, %c0_26], %45 {strides = array<i32>} : memref<16x256xbf16, #tpu.memory_space<vmem>>, vector<16x256xbf16>,
    } else {
    }
    %c128_i32 = arith.constant 128 : i32
    %3 = arith.muli %arg1, %c128_i32 : i32
    %4 = tpu.assume_multiple %3, 128 : i32
    %c0 = arith.constant 0 : index
    %c0_1 = arith.constant 0 : index
    %5 = arith.index_cast %4 : i32 to index
    %6 = vector.load %arg3[%c0, %c0_1, %5] : memref<1x17x256xf32, #tpu.memory_space<vmem>>, vector<1x17x128xf32>
    %7 = vector.shape_cast %6 : vector<1x17x128xf32> to vector<17x128xf32>
    %c0_2 = arith.constant 0 : index
    %c0_3 = arith.constant 0 : index
    %8 = vector.load %arg4[%c0_2, %c0_3] : memref<8x17xbf16, #tpu.memory_space<vmem>>, vector<8x17xbf16>
    %9 = arith.truncf %7 : vector<17x128xf32> to vector<17x128xbf16>
    %cst = arith.constant dense<0.000000e+00> : vector<8x128xf32>
    %10 = tpu.matmul %8, %9, %cst {dimension_numbers = #tpu.dot_dimension_numbers<[1], [0], [0], [1], [0, 0, 1, 1], [], []>} : vector<8x17xbf16>, vector<17x128xbf16>, vector<8x128xf32> -> vector<8x128xf32>
    %c0_4 = arith.constant 0 : index
    %c0_5 = arith.constant 0 : index
    %11 = vector.load %arg7[%c0_4, %c0_5] : memref<8x256xbf16, #tpu.memory_space<vmem>>, vector<8x256xbf16>
    %12 = arith.truncf %10 : vector<8x128xf32> to vector<8x128xbf16>
    %cst_6 = arith.constant dense<0.000000e+00> : vector<256x128xf32>
    %13 = tpu.matmul %11, %12, %cst_6 {dimension_numbers = #tpu.dot_dimension_numbers<[0], [0], [1], [1], [0, 1, 1, 1], [], []>} : vector<8x256xbf16>, vector<8x128xbf16>, vector<256x128xf32> -> vector<256x128xf32>
    %cst_7 = arith.constant dense<0xFF800000> : vector<128xf32>
    %14 = vector.multi_reduction <maximumf>, %13, %cst_7 [0] : vector<256x128xf32> to vector<128xf32>
    %15 = vector.shape_cast %14 : vector<128xf32> to vector<1x128xf32>
    %16 = vector.broadcast %15 : vector<1x128xf32> to vector<256x128xf32>
    %17 = arith.subf %13, %16 : vector<256x128xf32>
    %18 = math.exp %17 : vector<256x128xf32>
    %cst_8 = arith.constant dense<0.000000e+00> : vector<128xf32>
    %19 = vector.multi_reduction <add>, %18, %cst_8 [0] : vector<256x128xf32> to vector<128xf32>
    %20 = vector.shape_cast %19 : vector<128xf32> to vector<1x128xf32>
    %c0_9 = arith.constant 0 : index
    %c0_10 = arith.constant 0 : index
    %21 = vector.load %arg8[%c0_9, %c0_10] : memref<16x256xbf16, #tpu.memory_space<vmem>>, vector<16x256xbf16>
    %22 = arith.truncf %18 : vector<256x128xf32> to vector<256x128xbf16>
    %cst_11 = arith.constant dense<0.000000e+00> : vector<16x128xf32>
    %23 = tpu.matmul %21, %22, %cst_11 {dimension_numbers = #tpu.dot_dimension_numbers<[1], [0], [0], [1], [0, 0, 1, 1], [], []>} : vector<16x256xbf16>, vector<256x128xbf16>, vector<16x128xf32> -> vector<16x128xf32>
    %cst_12 = arith.constant 1.000000e+00 : f32
    %24 = vector.broadcast %cst_12 : f32 to vector<1x128xf32>
    %25 = arith.divf %24, %20 : vector<1x128xf32>
    %c0_13 = arith.constant 0 : index
    %26 = memref.load %arg2[%c0_13] : memref<1xf32, #tpu.memory_space<smem>>
    %27 = vector.extract_strided_slice %7 {offsets = [0, 0], sizes = [16, 128], strides = [1, 1]} : vector<17x128xf32> to vector<16x128xf32>
    %28 = vector.broadcast %25 : vector<1x128xf32> to vector<16x128xf32>
    %29 = arith.mulf %23, %28 : vector<16x128xf32>
    %30 = vector.broadcast %26 : f32 to vector<16x128xf32>
    %31 = arith.mulf %30, %29 : vector<16x128xf32>
    %32 = arith.addf %31, %27 : vector<16x128xf32>
    %c0_14 = arith.constant 0 : index
    %c0_15 = arith.constant 0 : index
    %c0_16 = arith.constant 0 : index
    %33 = vector.load %arg6[%c0_14, %c0_15, %c0_16] : memref<1x16x128xf32, #tpu.memory_space<vmem>>, vector<1x16x128xf32>
    %34 = vector.shape_cast %33 : vector<1x16x128xf32> to vector<16x128xf32>
    %35 = vector.shape_cast %32 : vector<16x128xf32> to vector<1x16x128xf32>
    tpu.vector_store %arg6[%c0_14, %c0_15, %c0_16], %35 {strides = array<i32>} : memref<1x16x128xf32, #tpu.memory_space<vmem>>, vector<1x16x128xf32>,
    return
  }
  func.func @transform_0(%arg0: i32, %arg1: i32) -> i32 {
    %c0_i32 = arith.constant 0 : i32
    %c0_i32_0 = arith.constant 0 : i32
    return %c0_i32 : i32
  }
  func.func @transform_1(%arg0: i32, %arg1: i32) -> (i32, i32, i32) {
    %c0_i32 = arith.constant 0 : i32
    %c0_i32_0 = arith.constant 0 : i32
    %c0_i32_1 = arith.constant 0 : i32
    return %arg0, %c0_i32, %c0_i32_0 : i32, i32, i32
  }
  func.func @transform_2(%arg0: i32, %arg1: i32) -> (i32, i32) {
    %c0_i32 = arith.constant 0 : i32
    %c0_i32_0 = arith.constant 0 : i32
    %c0_i32_1 = arith.constant 0 : i32
    return %c0_i32, %c0_i32_0 : i32, i32
  }
  func.func @transform_3(%arg0: i32, %arg1: i32) -> (i32, i32) {
    %c0_i32 = arith.constant 0 : i32
    %c0_i32_0 = arith.constant 0 : i32
    %c0_i32_1 = arith.constant 0 : i32
    return %c0_i32, %c0_i32_0 : i32, i32
  }
  func.func @transform_4(%arg0: i32, %arg1: i32) -> (i32, i32, i32) {
    %c0_i32 = arith.constant 0 : i32
    %c0_i32_0 = arith.constant 0 : i32
    return %arg0, %c0_i32, %arg1 : i32, i32, i32
  }
}

</mosaic_0001>

<llo_original>
// kernel: tpu_custom_call.1
$region0: #{tpu_custom_call.1}
  #allocation0 [shape = 'u32[]', space=smem, size = 0x4, offset = 0x4, fixed_abs, tag = 'smem constant byte address 0x4 - core index']
  #allocation1 [shape = 'u32[144,128]{1,0:T(1,128)}', space=vmem, size = 0x12000, scoped, tag = 'internal scratch']
  #allocation2 [shape = 'bf16[8,256]{1,0:T(8,128)(2,1)}', space=vmem, size = 0x1000, scoped, tag = 'scratch operand']
  #allocation3 [shape = 'bf16[16,256]{1,0:T(8,128)(2,1)}', space=vmem, size = 0x2000, scoped, tag = 'scratch operand']
  #allocation4 [shape = 'f32[1]{0:T(128)S(6)}', space=smem, size = 0x200, scoped, tag = 'scoped memory for tpu_custom_call.1']
  %s0 = inlined_call_operand.<no memory space> [shape: f32[1], index: 0, kind: input, shape index: {}]
  %s1 = inlined_call_operand.vmem [shape: f32[2,17,256], index: 1, kind: input, shape index: {}]
  %s2 = inlined_call_operand.vmem [shape: bf16[8,17], index: 2, kind: input, shape index: {}]
  %s3 = inlined_call_operand.vmem [shape: bf16[24,17], index: 3, kind: input, shape index: {}]
  %s4 = inlined_call_operand.hbm [shape: f32[2,16,256], index: 4, kind: output, shape index: {}]
  %s5 = sld [smem:[#allocation0]]
  $region53: #{tpu_custom_call.1} parent=0
    _
  %s7 = ssub.s32 1, %s5
  %s8 = scalar_select 0, %s7, %s5
  %9 = sst [smem:[#allocation4]] %s0
  $region1: #{tpu_custom_call.1} parent=0
    #allocation5 [shape = 'u8[16384]{0}', space=vmem, size = 0x4000, scoped, tag = 'output window, operand 0']
    #allocation6 [shape = 's32[2]{0}', space=sflag, size = 0x8, scoped, tag = 'scoped memory for tpu_custom_call.1']
    %10 = vsyncpa [#allocation6], 0
    %s11 = scalar_lea.sflag [#allocation6], 1
    %12 = vsyncpa %s11, 0
    loop: start=0, step=1, limit=6
    $region2: #{tpu_custom_call.1} parent=1 // loop_pre_header
      _
    $region3: #{tpu_custom_call.1} parent=1 // loop_header
      %s14 = sphi 0, %s18
      %p15 = scmp.ge.s32.totalorder %s14, 6
      %s21 = sphi 0, %s33
      %s22 = sphi 0, %s29
      %s23 = sphi 0, %s21
      %s24 = sphi 0, %s22
      %s25 = sphi 0, %s23
      %s26 = sphi 0, %s24
      %s34 = sphi 0, %s34
      %s36 = sphi 0, %s34
      %s37 = sphi 0, %s36
      %s51 = sphi 0, %s37
      %s57 = sphi 0, %s59
      %s60 = sphi 0, %s57
      %s61 = sphi 0, %s60
      %s77 = sphi 0, %s61
      %s81 = sphi 0, %s81
      %s83 = sphi 0, %s81
      %s84 = sphi 0, %s83
      %s98 = sphi 0, %s84
      %s102 = sphi 0, %s102
      %s104 = sphi 0, %s102
      %s105 = sphi 0, %s104
      %s119 = sphi 0, %s105
      %s127 = sphi 0, %s129
      %s130 = sphi 0, %s127
      %s131 = sphi 0, %s130
      %s147 = sphi 0, %s131
    $region4: #{tpu_custom_call.1} parent=1 // loop_header_branch
      %17 = sbr.rel (%p15) target = $region8
    $region5: #{tpu_custom_call.1} parent=1 // loop_body
      %s19 = ssub.s32 %s14, 1
      %s20 = ssub.s32 %s14, 2
      %s27 = sadd.s32 1, %s22
      %p28 = scmp.ge.s32.totalorder %s27, 2
      %s29 = scalar_select %p28, 0, %s27
      %s30 = sadd.s32 1, %s21
      %s31 = scalar_select %p28, %s30, %s21
      %p32 = scmp.ge.s32.totalorder %s31, 2
      %s33 = scalar_select %p32, 0, %s31
      %s35 = sadd.s32 %s34, 1
      %p38 = scmp.eq.s32.totalorder %s14, 3
      %p39 = scmp.ne.s32.totalorder %s34, %s36
      %p40 = scmp.eq.s32.totalorder %s14, 0
      %p41 = por %p39, %p40
      %p42 = scmp.ne.s32.totalorder %s34, %s36
      %p43 = scmp.eq.s32.totalorder %s19, 3
      %p44 = por %p42, %p43
      %p45 = scmp.ne.s32.totalorder %s36, %s37
      %p46 = scmp.eq.s32.totalorder %s19, 0
      %p47 = por %p45, %p46
      %p48 = scmp.ne.s32.totalorder %s36, %s37
      %p49 = scmp.eq.s32.totalorder %s20, 3
      %p50 = por %p48, %p49
      %p52 = scmp.ne.s32.totalorder %s37, %s51
      %p53 = scmp.eq.s32.totalorder %s20, 0
      %p54 = por %p52, %p53
      %s55 = ssub.s32 %s21, %s33
      %p56 = scmp.eq.s32.totalorder %s55, 0
      %s58 = sadd.s32 %s57, 1
      %s59 = scalar_select %p56, %s57, %s58
      %p62 = pneg %p56
      %p63 = scmp.eq.s32.totalorder %s14, 3
      %p64 = por %p62, %p63
      %p65 = scmp.ne.s32.totalorder %s57, %s60
      %p66 = scmp.eq.s32.totalorder %s14, 0
      %p67 = por %p65, %p66
      %p68 = scmp.ne.s32.totalorder %s57, %s60
      %p69 = scmp.eq.s32.totalorder %s19, 3
      %p70 = por %p68, %p69
      %p71 = scmp.ne.s32.totalorder %s60, %s61
      %p72 = scmp.eq.s32.totalorder %s19, 0
      %p73 = por %p71, %p72
      %p74 = scmp.ne.s32.totalorder %s60, %s61
      %p75 = scmp.eq.s32.totalorder %s20, 3
      %p76 = por %p74, %p75
      %p78 = scmp.ne.s32.totalorder %s61, %s77
      %p79 = scmp.eq.s32.totalorder %s20, 0
      %p80 = por %p78, %p79
      %s82 = sadd.s32 %s81, 1
      %p85 = scmp.eq.s32.totalorder %s14, 3
      %p86 = scmp.ne.s32.totalorder %s81, %s83
      %p87 = scmp.eq.s32.totalorder %s14, 0
      %p88 = por %p86, %p87
      %p89 = scmp.ne.s32.totalorder %s81, %s83
      %p90 = scmp.eq.s32.totalorder %s19, 3
      %p91 = por %p89, %p90
      %p92 = scmp.ne.s32.totalorder %s83, %s84
      %p93 = scmp.eq.s32.totalorder %s19, 0
      %p94 = por %p92, %p93
      %p95 = scmp.ne.s32.totalorder %s83, %s84
      %p96 = scmp.eq.s32.totalorder %s20, 3
      %p97 = por %p95, %p96
      %p99 = scmp.ne.s32.totalorder %s84, %s98
      %p100 = scmp.eq.s32.totalorder %s20, 0
      %p101 = por %p99, %p100
      %s103 = sadd.s32 %s102, 1
      %p106 = scmp.eq.s32.totalorder %s14, 3
      %p107 = scmp.ne.s32.totalorder %s102, %s104
      %p108 = scmp.eq.s32.totalorder %s14, 0
      %p109 = por %p107, %p108
      %p110 = scmp.ne.s32.totalorder %s102, %s104
      %p111 = scmp.eq.s32.totalorder %s19, 3
      %p112 = por %p110, %p111
      %p113 = scmp.ne.s32.totalorder %s104, %s105
      %p114 = scmp.eq.s32.totalorder %s19, 0
      %p115 = por %p113, %p114
      %p116 = scmp.ne.s32.totalorder %s104, %s105
      %p117 = scmp.eq.s32.totalorder %s20, 3
      %p118 = por %p116, %p117
      %p120 = scmp.ne.s32.totalorder %s105, %s119
      %p121 = scmp.eq.s32.totalorder %s20, 0
      %p122 = por %p120, %p121
      %s123 = ssub.s32 %s21, %s33
      %s124 = ssub.s32 %s22, %s29
      %s125 = sor.u32 %s123, %s124
      %p126 = scmp.eq.s32.totalorder %s125, 0
      %s128 = sadd.s32 %s127, 1
      %s129 = scalar_select %p126, %s127, %s128
      %p132 = pneg %p126
      %p133 = scmp.eq.s32.totalorder %s14, 3
      %p134 = por %p132, %p133
      %p135 = scmp.ne.s32.totalorder %s127, %s130
      %p136 = scmp.eq.s32.totalorder %s14, 0
      %p137 = por %p135, %p136
      %p138 = scmp.ne.s32.totalorder %s127, %s130
      %p139 = scmp.eq.s32.totalorder %s19, 3
      %p140 = por %p138, %p139
      %p141 = scmp.ne.s32.totalorder %s130, %s131
      %p142 = scmp.eq.s32.totalorder %s19, 0
      %p143 = por %p141, %p142
      %p144 = scmp.ne.s32.totalorder %s130, %s131
      %p145 = scmp.eq.s32.totalorder %s20, 3
      %p146 = por %p144, %p145
      %p148 = scmp.ne.s32.totalorder %s131, %s147
      %p149 = scmp.eq.s32.totalorder %s20, 0
      %p150 = por %p148, %p149
      %p151 = scmp.le.s32.totalorder 1, %s14
      %p152 = scmp.lt.s32.totalorder %s14, 5
      %p153 = pnand %p151, %p152
      %p154 = pneg %p153
      // Predicated region
      $region9: #{tpu_custom_call.1} parent=5 // pred_check
        _
      $region10: #{tpu_custom_call.1} parent=5 // pred_check_branch
        %156 = sbr.rel (%p153) target = $region12
      $region11: #{tpu_custom_call.1} parent=5 // pred_region
        %s157 = ssub.s32 %s14, 1
        // Predicated region
        $region13: #{tpu_custom_call.1} parent=11 // pred_check
          %p158 = pneg %p47
        $region14: #{tpu_custom_call.1} parent=11 // pred_check_branch
          %160 = sbr.rel (%p158) target = $region16
        $region15: #{tpu_custom_call.1} parent=11 // pred_region
          _
        $region16: #{tpu_custom_call.1} parent=11 // pred_fallthru
          _
        // Predicated region
        $region17: #{tpu_custom_call.1} parent=11 // pred_check
          %p161 = pneg %p94
        $region18: #{tpu_custom_call.1} parent=11 // pred_check_branch
          %163 = sbr.rel (%p161) target = $region20
        $region19: #{tpu_custom_call.1} parent=11 // pred_region
          _
        $region20: #{tpu_custom_call.1} parent=11 // pred_fallthru
          _
        // Predicated region
        $region21: #{tpu_custom_call.1} parent=11 // pred_check
          %p164 = pneg %p115
        $region22: #{tpu_custom_call.1} parent=11 // pred_check_branch
          %166 = sbr.rel (%p164) target = $region24
        $region23: #{tpu_custom_call.1} parent=11 // pred_region
          _
        $region24: #{tpu_custom_call.1} parent=11 // pred_fallthru
          _
      $region12: #{tpu_custom_call.1} parent=5 // pred_fallthru
        _
      %p167 = scmp.lt.s32.totalorder %s14, 4
      // Predicated region
      $region25: #{tpu_custom_call.1} parent=5 // pred_check
        %p168 = pneg %p167
      $region26: #{tpu_custom_call.1} parent=5 // pred_check_branch
        %170 = sbr.rel (%p168) target = $region28
      $region27: #{tpu_custom_call.1} parent=5 // pred_region
        // Predicated region
        $region29: #{tpu_custom_call.1} parent=27 // pred_check
          %p171 = pneg %p67
        $region30: #{tpu_custom_call.1} parent=27 // pred_check_branch
          %173 = sbr.rel (%p171) target = $region32
        $region31: #{tpu_custom_call.1} parent=27 // pred_region
          %p174 = scmp.lt.s32.totalorder %s21, 1
          %s175 = scalar_select %p174, %s21, 1
          %s176 = smul.addr %s175, 6
          %s177 = smul.addr %s176, 8
          %s178 = scalar_lea.vmem %s1, %s177
        $region32: #{tpu_custom_call.1} parent=27 // pred_fallthru
          _
      $region28: #{tpu_custom_call.1} parent=5 // pred_fallthru
        _
      %p179 = scmp.le.s32.totalorder 1, %s14
      %p180 = scmp.lt.s32.totalorder %s14, 5
      %p181 = pnand %p179, %p180
      %p182 = pneg %p181
      // Predicated region
      $region33: #{tpu_custom_call.1} parent=5 // pred_check
        _
      $region34: #{tpu_custom_call.1} parent=5 // pred_check_branch
        %184 = sbr.rel (%p181) target = $region36
      $region35: #{tpu_custom_call.1} parent=5 // pred_region
        %s185 = ssub.s32 %s14, 1
        %p186 = pneg %p47
        %p187 = pneg %p44
        %p188 = scmp.lt.s32.totalorder %s23, 1
        %s189 = scalar_select %p188, %s23, 1
        %s190 = smul.addr %s189, 6
        %s191 = smul.addr %s190, 8
        %s192 = scalar_lea.vmem %s1, %s191
        %p193 = pneg %p73
        %p194 = pneg %p70
        %p195 = pneg %p94
        %p196 = pneg %p91
        %p197 = pneg %p115
        %p198 = pneg %p112
        %p199 = pneg %p143
        %p200 = pneg %p140
        %s201 = sand.u32 %s130, 1
        %s202 = scalar_lea.sflag [#allocation6], %s201
        %s203 = sand.u32 %s130, 1
        %s204 = smul.addr %s203, 16
        %s205 = scalar_lea.vmem [#allocation5], %s204
        %p206 = scmp.lt.s32.totalorder %s23, 1
        %s207 = scalar_select %p206, %s23, 1
        %s208 = smul.addr %s207, 6
        %s209 = smul.addr %s208, 8
        %s210 = scalar_lea.vmem %s1, %s209
        %p212 = scmp.eq.s32.totalorder %s24, 0
        // Predicated region
        $region37: #{tpu_custom_call.1} parent=35 // pred_check
          %p213 = pneg %p212
        $region38: #{tpu_custom_call.1} parent=35 // pred_check_branch
          %215 = sbr.rel (%p213) target = $region40
        $region39: #{tpu_custom_call.1} parent=35 // pred_region
          %v216 = vld [vmem:[%s210] sm:$0xff]
          %v217 = vld [vmem:[%s210 + $0x8] sm:$0xff]
          %v218 = vld [vmem:[%s210 + $0x10] sm:$0xff]
          %v219 = vld [vmem:[%s210 + $0x18] sm:$0xff]
          %v220 = vld [vmem:[%s210 + $0x20] sm:$0x1]
          %v221 = vld [vmem:[%s210 + $0x28] sm:$0x1]
          %v222 = vpack.c.bf16 %v218, %v216
          %v223 = vpack.c.bf16 %v219, %v217
          %v224 = vpack.c.bf16 %v220, %v220
          %v225 = vpack.c.bf16 %v221, %v221
          %v226 = vld [vmem:[%s3] sm:$0xf]
          %v227 = vld [vmem:[%s3 + $0x4] sm:$0xf]
          %v228 = vld [vmem:[%s3 + $0x8] sm:$0xf]
          %v232 = vunpack.c.l.b16 %v226
          %v233 = vunpack.c.l.b16 %v227
          %v234 = vunpack.c.l.b16 %v228
          %v235 = vpack.c.b16 %v233, %v232
          %v236 = vpack.c.b16 %v234, %v234
          %vm237 = vcmask 138240
          %v239 = vsel %vm237, %v235, 0
          %v242 = vsel %vm237, %v236, 0
          %vm244 = vcmask 1040384
          %v245 = vsel 0, 4294967295, 65535
          %v246 = vsel %vm244, %v245, 0
          %v248 = vand.u32 %v224, %v246
          %v251 = vand.u32 %v225, %v246
          %253 = vmatprep.subr.bf16.mxu0 0
          %254 = vmatpush1.bf16.msra.mxu0 0
          %255 = vmatprep.subr.bf16.mxu0 0
          %256 = vmatpush1.bf16.msra.mxu0 0
          %257 = vmatprep.subr.bf16.mxu0 0
          %258 = vmatpush1.bf16.msra.mxu0 0
          %259 = vmatprep.subr.bf16.mxu0 0
          %260 = vmatpush1.bf16.msra.mxu0 0
          %261 = vmatprep.subr.bf16.mxu0 0
          %262 = vmatpush1.bf16.msra.mxu0 0
          %263 = vmatprep.subr.bf16.mxu0 0
          %264 = vmatpush1.bf16.msra.mxu0 0
          %265 = vmatprep.subr.bf16.mxu0 %v251
          %266 = vmatpush1.bf16.msra.mxu0 %v248
          %267 = vmatprep.subr.bf16.mxu0 %v223
          %268 = vmatpush1.bf16.msra.mxu0 %v222
          %269 = vmatprep.subr.bf16.mxu0 0
          %270 = vmatpush2.bf16.msra.mxu0 0
          %271 = vmatprep.subr.bf16.mxu0 0
          %272 = vmatpush2.bf16.msra.mxu0 0
          %273 = vmatprep.subr.bf16.mxu0 0
          %274 = vmatpush2.bf16.msra.mxu0 0
          %275 = vmatprep.subr.bf16.mxu0 0
          %276 = vmatpush2.bf16.msra.mxu0 0
          %277 = vmatprep.subr.bf16.mxu0 0
          %278 = vmatpush2.bf16.msra.mxu0 0
          %279 = vmatprep.subr.bf16.mxu0 0
          %280 = vmatpush2.bf16.msra.mxu0 0
          %281 = vmatprep.subr.bf16.mxu0 0
          %282 = vmatpush2.bf16.msra.mxu0 0
          %283 = vmatprep.subr.bf16.mxu0 0
          %284 = vmatpush2.bf16.msra.mxu0 0
          %285 = vmatprep.mubr.bf16.mxu0 0
          %286 = vmatmul.mubr.bf16.gmra.mxu0 %v239
          %v287 = vpop.f32.mrf.mxu0
          %v288 = vadd.f32 0.0, %v287
          %v289 = vpop.f32.mrf.mxu0
          %v290 = vadd.f32 0.0, %v289
          %v291 = vpop.f32.mrf.mxu0
          %v292 = vadd.f32 0.0, %v291
          %v293 = vpop.f32.mrf.mxu0
          %v294 = vadd.f32 0.0, %v293
          %295 = vmatprep.mubr.bf16.mxu0 0
          %296 = vmatmul.mubr.bf16.gmra.mxu0 %v242
          %v297 = vpop.f32.mrf.mxu0
          %v298 = vadd.f32 0.0, %v297
          %v299 = vpop.f32.mrf.mxu0
          %v300 = vadd.f32 0.0, %v299
          %v301 = vpop.f32.mrf.mxu0
          %v302 = vpop.f32.mrf.mxu0
          %303 = vdwg.mxu0
          %v304 = vpack.c.bf16 %v288, %v288
          %v305 = vpack.c.bf16 %v290, %v290
          %v308 = vunpack.c.l.b16 %v304
          %v309 = vunpack.c.l.b16 %v305
          %v310 = vpack.c.b16 %v309, %v308
          %312 = vst [vmem:[#allocation2] sm:$0xff] %v310
          %v313 = vpack.c.bf16 %v298, %v292
          %v314 = vpack.c.bf16 %v300, %v294
          %v317 = vunpack.c.l.b16 %v313
          %v318 = vunpack.c.l.b16 %v314
          %v319 = vunpack.c.h.b16 %v313
          %v320 = vunpack.c.h.b16 %v314
          %v321 = vpack.c.b16 %v318, %v317
          %v322 = vpack.c.b16 %v320, %v319
          %325 = vst [vmem:[#allocation3] sm:$0xff] %v321
          %326 = vst [vmem:[#allocation3 + $0x8] sm:$0xff] %v322
        $region40: #{tpu_custom_call.1} parent=35 // pred_fallthru
          _
        %s327 = smul.u32 %s24, 128
        %s328 = sshra.s32 %s327, 7
        %s329 = sand.u32 %s327, 127
        %s330 = smul.addr %s328, 8
        %s331 = scalar_lea.vmem %s210, %s330
        %v332 = vld [vmem:[%s331] sm:$0xff]
        %v333 = vld [vmem:[%s331 + $0x10] sm:$0xff]
        %v334 = vld [vmem:[%s331 + $0x20] sm:$0x1]
        %v335 = vld [vmem:[%s2] sm:$0xf]
        %v336 = vpack.c.bf16 %v333, %v332
        %v337 = vpack.c.bf16 %v334, %v334
        %vm338 = vcmask 138240
        %v340 = vsel %vm338, %v335, 0
        %vm342 = vcmask 1040384
        %v343 = vsel 0, 4294967295, 65535
        %v344 = vsel %vm342, %v343, 0
        %v346 = vand.u32 %v337, %v344
        %348 = vmatprep.subr.bf16.mxu0 0
        %349 = vmatpush1.bf16.msra.mxu0 0
        %350 = vmatprep.subr.bf16.mxu0 0
        %351 = vmatpush1.bf16.msra.mxu0 0
        %352 = vmatprep.subr.bf16.mxu0 0
        %353 = vmatpush1.bf16.msra.mxu0 0
        %354 = vmatprep.subr.bf16.mxu0 0
        %355 = vmatpush1.bf16.msra.mxu0 0
        %356 = vmatprep.subr.bf16.mxu0 0
        %357 = vmatpush1.bf16.msra.mxu0 0
        %358 = vmatprep.subr.bf16.mxu0 0
        %359 = vmatpush1.bf16.msra.mxu0 0
        %360 = vmatprep.subr.bf16.mxu0 0
        %361 = vmatpush1.bf16.msra.mxu0 %v346
        %362 = vmatprep.subr.bf16.mxu0 0
        %363 = vmatpush1.bf16.msra.mxu0 %v336
        %364 = vmatprep.subr.bf16.mxu0 0
        %365 = vmatpush2.bf16.msra.mxu0 0
        %366 = vmatprep.subr.bf16.mxu0 0
        %367 = vmatpush2.bf16.msra.mxu0 0
        %368 = vmatprep.subr.bf16.mxu0 0
        %369 = vmatpush2.bf16.msra.mxu0 0
        %370 = vmatprep.subr.bf16.mxu0 0
        %371 = vmatpush2.bf16.msra.mxu0 0
        %372 = vmatprep.subr.bf16.mxu0 0
        %373 = vmatpush2.bf16.msra.mxu0 0
        %374 = vmatprep.subr.bf16.mxu0 0
        %375 = vmatpush2.bf16.msra.mxu0 0
        %376 = vmatprep.subr.bf16.mxu0 0
        %377 = vmatpush2.bf16.msra.mxu0 0
        %378 = vmatprep.subr.bf16.mxu0 0
        %379 = vmatpush2.bf16.msra.mxu0 0
        %380 = vmatprep.mubr.bf16.mxu0 0
        %381 = vmatmul.mubr.bf16.gmra.mxu0 %v340
        %v382 = vpop.f32.mrf.mxu0
        %v383 = vadd.f32 0.0, %v382
        %v384 = vpop.f32.mrf.mxu0
        %v385 = vpop.f32.mrf.mxu0
        %v386 = vpop.f32.mrf.mxu0
        %387 = vdwg.mxu0
        %v388 = vld [vmem:[#allocation2] sm:$0xff]
        %v389 = vpack.c.bf16 %v383, %v383
        %v391 = vunpack.c.l.b16 %v388
        %v392 = vunpack.c.h.b16 %v388
        %v393 = vpack.c.b16 %v391, %v391
        %v394 = vpack.c.b16 %v392, %v392
        %397 = vxpose.xlu0.c.b16.start [1/8] %v393, 128
        %398 = vxpose.xlu0.c.b16.cont [2/8] 0, 128
        %399 = vxpose.xlu0.c.b16.cont [3/8] 0, 128
        %400 = vxpose.xlu0.c.b16.cont [4/8] 0, 128
        %401 = vxpose.xlu0.c.b16.cont [5/8] 0, 128
        %402 = vxpose.xlu0.c.b16.cont [6/8] 0, 128
        %403 = vxpose.xlu0.c.b16.cont [7/8] 0, 128
        %404 = vxpose.xlu0.c.b16.end [8/8] 0, 128
        %v405 = vpop.trf.xlu0
        %v406 = vpop.trf.xlu0
        %v407 = vpop.trf.xlu0
        %v408 = vpop.trf.xlu0
        %v409 = vpop.trf.xlu0
        %v410 = vpop.trf.xlu0
        %v411 = vpop.trf.xlu0
        %v412 = vpop.trf.xlu0
        %413 = vxpose.xlu0.c.b16.start [1/8] %v394, 128
        %414 = vxpose.xlu0.c.b16.cont [2/8] 0, 128
        %415 = vxpose.xlu0.c.b16.cont [3/8] 0, 128
        %416 = vxpose.xlu0.c.b16.cont [4/8] 0, 128
        %417 = vxpose.xlu0.c.b16.cont [5/8] 0, 128
        %418 = vxpose.xlu0.c.b16.cont [6/8] 0, 128
        %419 = vxpose.xlu0.c.b16.cont [7/8] 0, 128
        %420 = vxpose.xlu0.c.b16.end [8/8] 0, 128
        %v421 = vpop.trf.xlu0
        %v422 = vpop.trf.xlu0
        %v423 = vpop.trf.xlu0
        %v424 = vpop.trf.xlu0
        %v425 = vpop.trf.xlu0
        %v426 = vpop.trf.xlu0
        %v427 = vpop.trf.xlu0
        %v428 = vpop.trf.xlu0
        %vm429 = vcmask 64512
        %v431 = vsel %vm429, %v405, 0
        %v434 = vsel %vm429, %v406, 0
        %v437 = vsel %vm429, %v407, 0
        %v440 = vsel %vm429, %v408, 0
        %v443 = vsel %vm429, %v409, 0
        %v446 = vsel %vm429, %v410, 0
        %v449 = vsel %vm429, %v411, 0
        %v452 = vsel %vm429, %v412, 0
        %v455 = vsel %vm429, %v421, 0
        %v458 = vsel %vm429, %v422, 0
        %v461 = vsel %vm429, %v423, 0
        %v464 = vsel %vm429, %v424, 0
        %v467 = vsel %vm429, %v425, 0
        %v470 = vsel %vm429, %v426, 0
        %v473 = vsel %vm429, %v427, 0
        %v476 = vsel %vm429, %v428, 0
        %vm478 = vcmask 1043456
        %v480 = vsel %vm478, %v389, 0
        %482 = vmatprep.subr.bf16.mxu0 0
        %483 = vmatpush1.bf16.msra.mxu0 0
        %484 = vmatprep.subr.bf16.mxu0 0
        %485 = vmatpush1.bf16.msra.mxu0 0
        %486 = vmatprep.subr.bf16.mxu0 0
        %487 = vmatpush1.bf16.msra.mxu0 0
        %488 = vmatprep.subr.bf16.mxu0 0
        %489 = vmatpush1.bf16.msra.mxu0 0
        %490 = vmatprep.subr.bf16.mxu0 0
        %491 = vmatpush1.bf16.msra.mxu0 0
        %492 = vmatprep.subr.bf16.mxu0 0
        %493 = vmatpush1.bf16.msra.mxu0 0
        %494 = vmatprep.subr.bf16.mxu0 0
        %495 = vmatpush1.bf16.msra.mxu0 0
        %496 = vmatprep.subr.bf16.mxu0 0
        %497 = vmatpush1.bf16.msra.mxu0 %v480
        %498 = vmatprep.subr.bf16.mxu0 0
        %499 = vmatpush2.bf16.msra.mxu0 0
        %500 = vmatprep.subr.bf16.mxu0 0
        %501 = vmatpush2.bf16.msra.mxu0 0
        %502 = vmatprep.subr.bf16.mxu0 0
        %503 = vmatpush2.bf16.msra.mxu0 0
        %504 = vmatprep.subr.bf16.mxu0 0
        %505 = vmatpush2.bf16.msra.mxu0 0
        %506 = vmatprep.subr.bf16.mxu0 0
        %507 = vmatpush2.bf16.msra.mxu0 0
        %508 = vmatprep.subr.bf16.mxu0 0
        %509 = vmatpush2.bf16.msra.mxu0 0
        %510 = vmatprep.subr.bf16.mxu0 0
        %511 = vmatpush2.bf16.msra.mxu0 0
        %512 = vmatprep.subr.bf16.mxu0 0
        %513 = vmatpush2.bf16.msra.mxu0 0
        %514 = vmatprep.mubr.bf16.mxu0 0
        %515 = vmatmul.mubr.bf16.gmra.mxu0 %v431
        %v516 = vpop.f32.mrf.mxu0
        %v517 = vadd.f32 0.0, %v516
        %v518 = vpop.f32.mrf.mxu0
        %v519 = vpop.f32.mrf.mxu0
        %v520 = vadd.f32 0.0, %v519
        %v521 = vpop.f32.mrf.mxu0
        %522 = vmatprep.mubr.bf16.mxu0 0
        %523 = vmatmul.mubr.bf16.gmra.mxu0 %v434
        %v524 = vpop.f32.mrf.mxu0
        %v525 = vadd.f32 0.0, %v524
        %v526 = vpop.f32.mrf.mxu0
        %v527 = vpop.f32.mrf.mxu0
        %v528 = vadd.f32 0.0, %v527
        %v529 = vpop.f32.mrf.mxu0
        %530 = vmatprep.mubr.bf16.mxu0 0
        %531 = vmatmul.mubr.bf16.gmra.mxu0 %v437
        %v532 = vpop.f32.mrf.mxu0
        %v533 = vadd.f32 0.0, %v532
        %v534 = vpop.f32.mrf.mxu0
        %v535 = vpop.f32.mrf.mxu0
        %v536 = vadd.f32 0.0, %v535
        %v537 = vpop.f32.mrf.mxu0
        %538 = vmatprep.mubr.bf16.mxu0 0
        %539 = vmatmul.mubr.bf16.gmra.mxu0 %v440
        %v540 = vpop.f32.mrf.mxu0
        %v541 = vadd.f32 0.0, %v540
        %v542 = vpop.f32.mrf.mxu0
        %v543 = vpop.f32.mrf.mxu0
        %v544 = vadd.f32 0.0, %v543
        %v545 = vpop.f32.mrf.mxu0
        %546 = vmatprep.mubr.bf16.mxu0 0
        %547 = vmatmul.mubr.bf16.gmra.mxu0 %v443
        %v548 = vpop.f32.mrf.mxu0
        %v549 = vadd.f32 0.0, %v548
        %v550 = vpop.f32.mrf.mxu0
        %v551 = vpop.f32.mrf.mxu0
        %v552 = vadd.f32 0.0, %v551
        %v553 = vpop.f32.mrf.mxu0
        %554 = vmatprep.mubr.bf16.mxu0 0
        %555 = vmatmul.mubr.bf16.gmra.mxu0 %v446
        %v556 = vpop.f32.mrf.mxu0
        %v557 = vadd.f32 0.0, %v556
        %v558 = vpop.f32.mrf.mxu0
        %v559 = vpop.f32.mrf.mxu0
        %v560 = vadd.f32 0.0, %v559
        %v561 = vpop.f32.mrf.mxu0
        %562 = vmatprep.mubr.bf16.mxu0 0
        %563 = vmatmul.mubr.bf16.gmra.mxu0 %v449
        %v564 = vpop.f32.mrf.mxu0
        %v565 = vadd.f32 0.0, %v564
        %v566 = vpop.f32.mrf.mxu0
        %v567 = vpop.f32.mrf.mxu0
        %v568 = vadd.f32 0.0, %v567
        %v569 = vpop.f32.mrf.mxu0
        %570 = vmatprep.mubr.bf16.mxu0 0
        %571 = vmatmul.mubr.bf16.gmra.mxu0 %v452
        %v572 = vpop.f32.mrf.mxu0
        %v573 = vadd.f32 0.0, %v572
        %v574 = vpop.f32.mrf.mxu0
        %v575 = vpop.f32.mrf.mxu0
        %v576 = vadd.f32 0.0, %v575
        %v577 = vpop.f32.mrf.mxu0
        %578 = vmatprep.mubr.bf16.mxu0 0
        %579 = vmatmul.mubr.bf16.gmra.mxu0 %v455
        %v580 = vpop.f32.mrf.mxu0
        %v581 = vadd.f32 0.0, %v580
        %v582 = vpop.f32.mrf.mxu0
        %v583 = vpop.f32.mrf.mxu0
        %v584 = vadd.f32 0.0, %v583
        %v585 = vpop.f32.mrf.mxu0
        %586 = vmatprep.mubr.bf16.mxu0 0
        %587 = vmatmul.mubr.bf16.gmra.mxu0 %v458
        %v588 = vpop.f32.mrf.mxu0
        %v589 = vadd.f32 0.0, %v588
        %v590 = vpop.f32.mrf.mxu0
        %v591 = vpop.f32.mrf.mxu0
        %v592 = vadd.f32 0.0, %v591
        %v593 = vpop.f32.mrf.mxu0
        %594 = vmatprep.mubr.bf16.mxu0 0
        %595 = vmatmul.mubr.bf16.gmra.mxu0 %v461
        %v596 = vpop.f32.mrf.mxu0
        %v597 = vadd.f32 0.0, %v596
        %v598 = vpop.f32.mrf.mxu0
        %v599 = vpop.f32.mrf.mxu0
        %v600 = vadd.f32 0.0, %v599
        %v601 = vpop.f32.mrf.mxu0
        %602 = vmatprep.mubr.bf16.mxu0 0
        %603 = vmatmul.mubr.bf16.gmra.mxu0 %v464
        %v604 = vpop.f32.mrf.mxu0
        %v605 = vadd.f32 0.0, %v604
        %v606 = vpop.f32.mrf.mxu0
        %v607 = vpop.f32.mrf.mxu0
        %v608 = vadd.f32 0.0, %v607
        %v609 = vpop.f32.mrf.mxu0
        %610 = vmatprep.mubr.bf16.mxu0 0
        %611 = vmatmul.mubr.bf16.gmra.mxu0 %v467
        %v612 = vpop.f32.mrf.mxu0
        %v613 = vadd.f32 0.0, %v612
        %v614 = vpop.f32.mrf.mxu0
        %v615 = vpop.f32.mrf.mxu0
        %v616 = vadd.f32 0.0, %v615
        %v617 = vpop.f32.mrf.mxu0
        %618 = vmatprep.mubr.bf16.mxu0 0
        %619 = vmatmul.mubr.bf16.gmra.mxu0 %v470
        %v620 = vpop.f32.mrf.mxu0
        %v621 = vadd.f32 0.0, %v620
        %v622 = vpop.f32.mrf.mxu0
        %v623 = vpop.f32.mrf.mxu0
        %v624 = vadd.f32 0.0, %v623
        %v625 = vpop.f32.mrf.mxu0
        %626 = vmatprep.mubr.bf16.mxu0 0
        %627 = vmatmul.mubr.bf16.gmra.mxu0 %v473
        %v628 = vpop.f32.mrf.mxu0
        %v629 = vadd.f32 0.0, %v628
        %v630 = vpop.f32.mrf.mxu0
        %v631 = vpop.f32.mrf.mxu0
        %v632 = vadd.f32 0.0, %v631
        %v633 = vpop.f32.mrf.mxu0
        %634 = vmatprep.mubr.bf16.mxu0 0
        %635 = vmatmul.mubr.bf16.gmra.mxu0 %v476
        %v636 = vpop.f32.mrf.mxu0
        %v637 = vadd.f32 0.0, %v636
        %v638 = vpop.f32.mrf.mxu0
        %v639 = vpop.f32.mrf.mxu0
        %v640 = vadd.f32 0.0, %v639
        %v641 = vpop.f32.mrf.mxu0
        %642 = vdwg.mxu0
        %v643 = vmax.f32 %v517, %v533
        %v644 = vmax.f32 %v520, %v536
        %v645 = vmax.f32 %v525, %v541
        %v646 = vmax.f32 %v528, %v544
        %v647 = vmax.f32 %v643, %v549
        %v648 = vmax.f32 %v644, %v552
        %v649 = vmax.f32 %v645, %v557
        %v650 = vmax.f32 %v646, %v560
        %v651 = vmax.f32 %v647, %v565
        %v652 = vmax.f32 %v648, %v568
        %v653 = vmax.f32 %v649, %v573
        %v654 = vmax.f32 %v650, %v576
        %v655 = vmax.f32 %v651, %v581
        %v656 = vmax.f32 %v652, %v584
        %v657 = vmax.f32 %v653, %v589
        %v658 = vmax.f32 %v654, %v592
        %v659 = vmax.f32 %v655, %v597
        %v660 = vmax.f32 %v656, %v600
        %v661 = vmax.f32 %v657, %v605
        %v662 = vmax.f32 %v658, %v608
        %v663 = vmax.f32 %v659, %v613
        %v664 = vmax.f32 %v660, %v616
        %v665 = vmax.f32 %v661, %v621
        %v666 = vmax.f32 %v662, %v624
        %v667 = vmax.f32 %v663, %v629
        %v668 = vmax.f32 %v664, %v632
        %v669 = vmax.f32 %v665, %v637
        %v670 = vmax.f32 %v666, %v640
        %v671 = vmax.f32 %v667, %v668
        %v672 = vmax.f32 %v669, %v670
        %v673 = vmax.f32 %v671, %v672
        %v674 = vrot.slane %v673, 4
        %v675 = vmax.f32 %v673, %v674
        %v676 = vrot.slane %v675, 2
        %v677 = vmax.f32 %v675, %v676
        %v678 = vrot.slane %v677, 1
        %v679 = vmax.f32 %v677, %v678
        %v680 = vsub.f32 %v517, %v679
        %v681 = vsub.f32 %v520, %v679
        %v682 = vsub.f32 %v525, %v679
        %v683 = vsub.f32 %v528, %v679
        %v684 = vsub.f32 %v533, %v679
        %v685 = vsub.f32 %v536, %v679
        %v686 = vsub.f32 %v541, %v679
        %v687 = vsub.f32 %v544, %v679
        %v688 = vsub.f32 %v549, %v679
        %v689 = vsub.f32 %v552, %v679
        %v690 = vsub.f32 %v557, %v679
        %v691 = vsub.f32 %v560, %v679
        %v692 = vsub.f32 %v565, %v679
        %v693 = vsub.f32 %v568, %v679
        %v694 = vsub.f32 %v573, %v679
        %v695 = vsub.f32 %v576, %v679
        %v696 = vsub.f32 %v581, %v679
        %v697 = vsub.f32 %v584, %v679
        %v698 = vsub.f32 %v589, %v679
        %v699 = vsub.f32 %v592, %v679
        %v700 = vsub.f32 %v597, %v679
        %v701 = vsub.f32 %v600, %v679
        %v702 = vsub.f32 %v605, %v679
        %v703 = vsub.f32 %v608, %v679
        %v704 = vsub.f32 %v613, %v679
        %v705 = vsub.f32 %v616, %v679
        %v706 = vsub.f32 %v621, %v679
        %v707 = vsub.f32 %v624, %v679
        %v708 = vsub.f32 %v629, %v679
        %v709 = vsub.f32 %v632, %v679
        %v710 = vsub.f32 %v637, %v679
        %v711 = vsub.f32 %v640, %v679
        %v712 = vmul.f32 %v680, 1.442695
        %v713 = vpow.pop %v712
        %v714 = vmul.f32 %v681, 1.442695
        %v715 = vpow.pop %v714
        %v716 = vmul.f32 %v682, 1.442695
        %v717 = vpow.pop %v716
        %v718 = vmul.f32 %v683, 1.442695
        %v719 = vpow.pop %v718
        %v720 = vmul.f32 %v684, 1.442695
        %v721 = vpow.pop %v720
        %v722 = vmul.f32 %v685, 1.442695
        %v723 = vpow.pop %v722
        %v724 = vmul.f32 %v686, 1.442695
        %v725 = vpow.pop %v724
        %v726 = vmul.f32 %v687, 1.442695
        %v727 = vpow.pop %v726
        %v728 = vmul.f32 %v688, 1.442695
        %v729 = vpow.pop %v728
        %v730 = vmul.f32 %v689, 1.442695
        %v731 = vpow.pop %v730
        %v732 = vmul.f32 %v690, 1.442695
        %v733 = vpow.pop %v732
        %v734 = vmul.f32 %v691, 1.442695
        %v735 = vpow.pop %v734
        %v736 = vmul.f32 %v692, 1.442695
        %v737 = vpow.pop %v736
        %v738 = vmul.f32 %v693, 1.442695
        %v739 = vpow.pop %v738
        %v740 = vmul.f32 %v694, 1.442695
        %v741 = vpow.pop %v740
        %v742 = vmul.f32 %v695, 1.442695
        %v743 = vpow.pop %v742
        %v744 = vmul.f32 %v696, 1.442695
        %v745 = vpow.pop %v744
        %v746 = vmul.f32 %v697, 1.442695
        %v747 = vpow.pop %v746
        %v748 = vmul.f32 %v698, 1.442695
        %v749 = vpow.pop %v748
        %v750 = vmul.f32 %v699, 1.442695
        %v751 = vpow.pop %v750
        %v752 = vmul.f32 %v700, 1.442695
        %v753 = vpow.pop %v752
        %v754 = vmul.f32 %v701, 1.442695
        %v755 = vpow.pop %v754
        %v756 = vmul.f32 %v702, 1.442695
        %v757 = vpow.pop %v756
        %v758 = vmul.f32 %v703, 1.442695
        %v759 = vpow.pop %v758
        %v760 = vmul.f32 %v704, 1.442695
        %v761 = vpow.pop %v760
        %v762 = vmul.f32 %v705, 1.442695
        %v763 = vpow.pop %v762
        %v764 = vmul.f32 %v706, 1.442695
        %v765 = vpow.pop %v764
        %v766 = vmul.f32 %v707, 1.442695
        %v767 = vpow.pop %v766
        %v768 = vmul.f32 %v708, 1.442695
        %v769 = vpow.pop %v768
        %v770 = vmul.f32 %v709, 1.442695
        %v771 = vpow.pop %v770
        %v772 = vmul.f32 %v710, 1.442695
        %v773 = vpow.pop %v772
        %v774 = vmul.f32 %v711, 1.442695
        %v775 = vpow.pop %v774
        %v776 = vadd.f32 %v713, %v715
        %v777 = vadd.f32 %v776, %v717
        %v778 = vadd.f32 %v777, %v719
        %v779 = vadd.f32 %v778, %v721
        %v780 = vadd.f32 %v779, %v723
        %v781 = vadd.f32 %v780, %v725
        %v782 = vadd.f32 %v781, %v727
        %v783 = vadd.f32 %v782, %v729
        %v784 = vadd.f32 %v783, %v731
        %v785 = vadd.f32 %v784, %v733
        %v786 = vadd.f32 %v785, %v735
        %v787 = vadd.f32 %v786, %v737
        %v788 = vadd.f32 %v787, %v739
        %v789 = vadd.f32 %v788, %v741
        %v790 = vadd.f32 %v789, %v743
        %v791 = vadd.f32 %v790, %v745
        %v792 = vadd.f32 %v791, %v747
        %v793 = vadd.f32 %v792, %v749
        %v794 = vadd.f32 %v793, %v751
        %v795 = vadd.f32 %v794, %v753
        %v796 = vadd.f32 %v795, %v755
        %v797 = vadd.f32 %v796, %v757
        %v798 = vadd.f32 %v797, %v759
        %v799 = vadd.f32 %v798, %v761
        %v800 = vadd.f32 %v799, %v763
        %v801 = vadd.f32 %v800, %v765
        %v802 = vadd.f32 %v801, %v767
        %v803 = vadd.f32 %v802, %v769
        %v804 = vadd.f32 %v803, %v771
        %v805 = vadd.f32 %v804, %v773
        %v806 = vadd.f32 %v805, %v775
        %v807 = vrot.slane %v806, 4
        %v808 = vadd.f32 %v806, %v807
        %v809 = vrot.slane %v808, 2
        %v810 = vadd.f32 %v808, %v809
        %v811 = vrot.slane %v810, 1
        %v812 = vadd.f32 %v810, %v811
        %v813 = vld [vmem:[#allocation3] sm:$0xff]
        %v814 = vld [vmem:[#allocation3 + $0x8] sm:$0xff]
        %v815 = vpack.c.bf16 %v715, %v713
        %v816 = vpack.c.bf16 %v719, %v717
        %v817 = vpack.c.bf16 %v723, %v721
        %v818 = vpack.c.bf16 %v727, %v725
        %v819 = vpack.c.bf16 %v731, %v729
        %v820 = vpack.c.bf16 %v735, %v733
        %v821 = vpack.c.bf16 %v739, %v737
        %v822 = vpack.c.bf16 %v743, %v741
        %v823 = vpack.c.bf16 %v747, %v745
        %v824 = vpack.c.bf16 %v751, %v749
        %v825 = vpack.c.bf16 %v755, %v753
        %v826 = vpack.c.bf16 %v759, %v757
        %v827 = vpack.c.bf16 %v763, %v761
        %v828 = vpack.c.bf16 %v767, %v765
        %v829 = vpack.c.bf16 %v771, %v769
        %v830 = vpack.c.bf16 %v775, %v773
        %v833 = vunpack.c.l.b16 %v813
        %v834 = vunpack.c.h.b16 %v813
        %v835 = vunpack.c.l.b16 %v814
        %v836 = vunpack.c.h.b16 %v814
        %v837 = vpack.c.b16 %v835, %v833
        %v838 = vpack.c.b16 %v836, %v834
        %841 = vmatprep.subr.bf16.mxu0 0
        %842 = vmatpush1.bf16.msra.mxu0 %v822
        %843 = vmatprep.subr.bf16.mxu0 0
        %844 = vmatpush1.bf16.msra.mxu0 %v821
        %845 = vmatprep.subr.bf16.mxu0 0
        %846 = vmatpush1.bf16.msra.mxu0 %v820
        %847 = vmatprep.subr.bf16.mxu0 0
        %848 = vmatpush1.bf16.msra.mxu0 %v819
        %849 = vmatprep.subr.bf16.mxu0 0
        %850 = vmatpush1.bf16.msra.mxu0 %v818
        %851 = vmatprep.subr.bf16.mxu0 0
        %852 = vmatpush1.bf16.msra.mxu0 %v817
        %853 = vmatprep.subr.bf16.mxu0 0
        %854 = vmatpush1.bf16.msra.mxu0 %v816
        %855 = vmatprep.subr.bf16.mxu0 0
        %856 = vmatpush1.bf16.msra.mxu0 %v815
        %857 = vmatprep.subr.bf16.mxu0 0
        %858 = vmatpush2.bf16.msra.mxu0 %v830
        %859 = vmatprep.subr.bf16.mxu0 0
        %860 = vmatpush2.bf16.msra.mxu0 %v829
        %861 = vmatprep.subr.bf16.mxu0 0
        %862 = vmatpush2.bf16.msra.mxu0 %v828
        %863 = vmatprep.subr.bf16.mxu0 0
        %864 = vmatpush2.bf16.msra.mxu0 %v827
        %865 = vmatprep.subr.bf16.mxu0 0
        %866 = vmatpush2.bf16.msra.mxu0 %v826
        %867 = vmatprep.subr.bf16.mxu0 0
        %868 = vmatpush2.bf16.msra.mxu0 %v825
        %869 = vmatprep.subr.bf16.mxu0 0
        %870 = vmatpush2.bf16.msra.mxu0 %v824
        %871 = vmatprep.subr.bf16.mxu0 0
        %872 = vmatpush2.bf16.msra.mxu0 %v823
        %873 = vmatprep.mubr.bf16.mxu0 %v838
        %874 = vmatmul.mubr.bf16.gmra.mxu0 %v837
        %v875 = vpop.f32.mrf.mxu0
        %v876 = vadd.f32 0.0, %v875
        %v877 = vpop.f32.mrf.mxu0
        %v878 = vpop.f32.mrf.mxu0
        %v879 = vadd.f32 0.0, %v878
        %v880 = vpop.f32.mrf.mxu0
        %881 = vdwg.mxu0
        %v882 = vrcp.pop %v812
        %v883 = vmul.f32 1.0, %v882
        %s884 = sld [smem:[#allocation4]]
        %v885 = vmul.f32 %v876, %v883
        %v886 = vmul.f32 %v879, %v883
        %v887 = vstv %s884
        %v888 = vmul.f32 %v887, %v885
        %v889 = vmul.f32 %v887, %v886
        %v890 = vadd.f32 %v888, %v332
        %v891 = vadd.f32 %v889, %v333
        %892 = vst [vmem:[%s205] sm:$0xff] %v890
        %893 = vst [vmem:[%s205 + $0x8] sm:$0xff] %v891
        %s894 = sand.u32 %s130, 1
        %s895 = scalar_lea.sflag [#allocation6], %s894
        %s896 = sand.u32 %s130, 1
        %s897 = smul.addr %s896, 16
        %s898 = scalar_lea.vmem [#allocation5], %s897
        // Predicated region
        $region41: #{tpu_custom_call.1} parent=35 // pred_check
          %p899 = pneg %p140
        $region42: #{tpu_custom_call.1} parent=35 // pred_check_branch
          %901 = sbr.rel (%p899) target = $region44
        $region43: #{tpu_custom_call.1} parent=35 // pred_region
          %s903 = ssub.s32 256, 256
          %904 = vsyncadd %s895, %s903
          %s905 = smul.addr %s23, 4
          %s906 = sadd.s32 %s24, %s905
          %s907 = smul.addr %s906, 128
          %s908 = scalar_lea.hbm %s4, %s907
          %s909 = sshll.u32 %s898, 4
          %s910 = int_to_ptr.vmem [resolvable:$true] %s909
          %915 = dma.vmem_to_hbm [thread:$0]  %s910, 256, %s908, %s895, 128, 256, 8
        $region44: #{tpu_custom_call.1} parent=35 // pred_fallthru
          _
      $region36: #{tpu_custom_call.1} parent=5 // pred_fallthru
        _
      %p916 = scmp.le.s32.totalorder 2, %s14
      // Predicated region
      $region45: #{tpu_custom_call.1} parent=5 // pred_check
        %p917 = pneg %p916
      $region46: #{tpu_custom_call.1} parent=5 // pred_check_branch
        %919 = sbr.rel (%p917) target = $region48
      $region47: #{tpu_custom_call.1} parent=5 // pred_region
        %s920 = ssub.s32 %s14, 2
        // Predicated region
        $region49: #{tpu_custom_call.1} parent=47 // pred_check
          %p921 = pneg %p146
        $region50: #{tpu_custom_call.1} parent=47 // pred_check_branch
          %923 = sbr.rel (%p921) target = $region52
        $region51: #{tpu_custom_call.1} parent=47 // pred_region
          %s924 = sand.u32 %s131, 1
          %s925 = scalar_lea.sflag [#allocation6], %s924
          %s926 = sand.u32 %s131, 1
          %s927 = smul.addr %s926, 16
          %s928 = scalar_lea.vmem [#allocation5], %s927
          %929 = dma.done %s925, 256
        $region52: #{tpu_custom_call.1} parent=47 // pred_fallthru
          _
      $region48: #{tpu_custom_call.1} parent=5 // pred_fallthru
        _
    $region6: #{tpu_custom_call.1} parent=1 // loop_footer
      %s18 = sadd.s32 1, %s14
    $region7: #{tpu_custom_call.1} parent=1 // loop_footer_branch
      %13 = sbr.rel target = $region3
    $region8: #{tpu_custom_call.1} parent=1 // loop_exit
      _
    %930 = vsyncpa [#allocation6], 1
    %s931 = scalar_lea.sflag [#allocation6], 1
    %932 = vsyncpa %s931, 1

</llo_original>
